<compile_context>
chip_gen: v7x
topology: tpu7x:2x2x1
jax: 0.10.0
libtpu: 0.0.40
codegen_flags: <defaults>
</compile_context>

<pallas_src>
import functools

import jax
import jax.numpy as jnp
from jax.experimental import pallas as pl
from jax.experimental.pallas import tpu as pltpu

BN_EPS = 1e-5


def _round_up(x, m):
    return (x + m - 1) // m * m


def _registrator_kernel(x_ref, w_ref, p_ref, o_ref, *, n_valid):
    """One z-tile grid step: ReLU(BatchNorm1d(x @ W)) for BOTH branches.

    Shapes seen by the kernel:
      x:(2, Np, F)   w:(2, F, TZ)   p:(4, TZ)  [gamma_s, beta_s, gamma_q, beta_q]
      o:(2, Np, TZ)
    n_valid is a static Python tuple (ns, nq); rows >= n_valid[br] are zero padding.
    The Linear bias is intentionally absent (cancelled by the BN mean subtraction).
    """
    n_rows = x_ref.shape[1]
    params = p_ref[...]  # (4, TZ)

    for br in range(2):  # unrolled at trace time
        nv = int(n_valid[br])
        inv_n = 1.0 / float(nv)

        # Linear (no bias): MXU matmul, f32 accumulation, operands in input dtype.
        y = jnp.dot(x_ref[br], w_ref[br], preferred_element_type=jnp.float32)

        # Padded batch rows of x are zero and there is no bias, so their y rows are
        # exactly zero -> the mean sum needs no mask.
        mean = jnp.sum(y, axis=0, keepdims=True) * inv_n  # (1, TZ)

        # Mean-shifted variance (stable); mask padded rows only when they exist
        # (decided at trace time -> zero-cost fast path for aligned batches).
        c = y - mean
        if nv != n_rows:
            row_ids = jax.lax.broadcasted_iota(jnp.int32, (n_rows, 1), 0)
            c = jnp.where(row_ids < nv, c, 0.0)
        var = jnp.sum(c * c, axis=0, keepdims=True) * inv_n  # (1, TZ)

        gamma = params[2 * br : 2 * br + 1, :]  # (1, TZ)
        beta = params[2 * br + 1 : 2 * br + 2, :]  # (1, TZ)

        # Folded BN affine: out = relu(y * scale + shift)
        scale = gamma * jax.lax.rsqrt(var + BN_EPS)  # (1, TZ)
        shift = beta - mean * scale  # (1, TZ)
        out = jnp.maximum(y * scale + shift, 0.0)

        o_ref[br] = out.astype(o_ref.dtype)


def pack_registrator_params(params, tz=None):
    """Pad / stack per-branch parameters ONCE (hoisted out of the forward path)."""
    ps, pq = params["support"], params["query"]
    f_dim, z_dim = ps["w"].shape

    if tz is None:
        # 128-wide tiles already fill the v5e MXU; use 256 for wider Z to fill the
        # 256-wide v6e/v7x MXU and halve grid-step overhead.
        tz = 128 if z_dim <= 128 else 256
    z_pad = _round_up(z_dim, tz)
    dz = z_pad - z_dim

    def pad_w(w):
        return jnp.pad(w, ((0, 0), (0, dz)))

    def pad_v(v, cv=0.0):
        return jnp.pad(v, (0, dz), constant_values=cv)

    w = jnp.stack([pad_w(ps["w"]), pad_w(pq["w"])])  # (2, F, Zp)
    # NOTE: Linear bias deliberately not packed -- it is cancelled by BatchNorm.
    gb = jnp.stack(
        [
            pad_v(ps["gamma"], 1.0),
            pad_v(ps["beta"]),
            pad_v(pq["gamma"], 1.0),
            pad_v(pq["beta"]),
        ]
    ).astype(jnp.float32)  # (4, Zp)

    return dict(w=w, gb=gb, f_dim=f_dim, z_dim=z_dim, z_pad=z_pad, tz=tz)


def registrator_forward(packed, support_set, query_set):
    """Fused forward for both branches: one pallas_call, grid=(Zp // TZ,)."""
    f_dim = packed["f_dim"]
    z_dim = packed["z_dim"]
    z_pad = packed["z_pad"]
    tz = packed["tz"]
    assert support_set.shape[1] == f_dim and query_set.shape[1] == f_dim

    ns, nq = support_set.shape[0], query_set.shape[0]
    # Dtype-aware sublane rounding: 8 rows (f32), 16 (bf16), 32 (int8/fp8).
    itemsize = jnp.dtype(support_set.dtype).itemsize
    sub = 8 * max(1, 4 // itemsize)
    n_pad = _round_up(max(ns, nq, 1), sub)

    def pad_rows(a):
        return jnp.pad(a, ((0, n_pad - a.shape[0]), (0, 0)))

    x = jnp.stack([pad_rows(support_set), pad_rows(query_set)])  # (2, Np, F)

    n_zt = z_pad // tz
    kernel = functools.partial(_registrator_kernel, n_valid=(ns, nq))

    out = pl.pallas_call(
        kernel,
        out_shape=jax.ShapeDtypeStruct((2, n_pad, z_pad), support_set.dtype),
        grid_spec=pltpu.PrefetchScalarGridSpec(
            num_scalar_prefetch=0,
            grid=(n_zt,),  # z-tile axis only; both branches handled in-body
            in_specs=[
                # x is resident across z-tiles (index_map constant in j).
                pl.BlockSpec((2, n_pad, f_dim), lambda j: (0, 0, 0)),
                pl.BlockSpec((2, f_dim, tz), lambda j: (0, 0, j)),
                pl.BlockSpec((4, tz), lambda j: (0, j)),
            ],
            out_specs=pl.BlockSpec((2, n_pad, tz), lambda j: (0, 0, j)),
        ),
        compiler_params=pltpu.CompilerParams(
            # BN stats are per-feature, so z-tiles are fully independent
            # (shards across v7x's 2 TensorCores when n_zt > 1).
            dimension_semantics=("parallel",)
        ),
    )(x, packed["w"], packed["gb"])

    support_out = out[0, :ns, :z_dim]
    query_out = out[1, :nq, :z_dim]
    return support_out, query_out


def init_registrator_params(key, f_dim, z_dim):
    """Deterministic init matching the shapes of Registrator.__init__ (synthetic)."""
    k1, k2, k3, k4 = jax.random.split(key, 4)
    bound = 1.0 / jnp.sqrt(f_dim)

    def branch(kw, kb):
        # nn.Linear(f_dim, z_dim): weight (z_dim, f_dim) -- stored transposed (f_dim, z_dim)
        w = jax.random.uniform(kw, (f_dim, z_dim), jnp.float32, -bound, bound)
        b = jax.random.uniform(kb, (z_dim,), jnp.float32, -bound, bound)
        gamma = jnp.ones((z_dim,), jnp.float32)  # BatchNorm1d weight
        beta = jnp.zeros((z_dim,), jnp.float32)  # BatchNorm1d bias
        return dict(w=w, b=b, gamma=gamma, beta=beta)

    return dict(support=branch(k1, k2), query=branch(k3, k4))


def _reference_branch(x, p):
    y = x @ p["w"] + p["b"]
    mean = jnp.mean(y, axis=0, keepdims=True)
    var = jnp.mean((y - mean) ** 2, axis=0, keepdims=True)
    y_hat = (y - mean) / jnp.sqrt(var + BN_EPS)
    return jnp.maximum(y_hat * p["gamma"] + p["beta"], 0.0)


if __name__ == "__main__":
    f_dim, z_dim = 32, 32
    n_support, n_query = 8, 8

    key = jax.random.PRNGKey(0)
    k_params, k_s, k_q = jax.random.split(key, 3)

    params = init_registrator_params(k_params, f_dim, z_dim)
    packed = pack_registrator_params(params)  # pad/stack ONCE, reused every call

    support_set = jax.random.normal(k_s, (n_support, f_dim), jnp.float32)
    query_set = jax.random.normal(k_q, (n_query, f_dim), jnp.float32)

    support_out, query_out = registrator_forward(packed, support_set, query_set)
    jax.block_until_ready((support_out, query_out))

    # sanity check against pure-JAX reference (with bias -- it cancels under BN)
    ref_s = _reference_branch(support_set, params["support"])
    ref_q = _reference_branch(query_set, params["query"])
    assert support_out.shape == (n_support, z_dim)
    assert query_out.shape == (n_query, z_dim)
    assert jnp.allclose(support_out, ref_s, atol=1e-4, rtol=1e-4)
    assert jnp.allclose(query_out, ref_q, atol=1e-4, rtol=1e-4)

    # also exercise the unequal-batch path (padded rows masked out of BN variance)
    query_small = query_set[:6]
    s2, q2 = registrator_forward(packed, support_set, query_small)
    jax.block_until_ready((s2, q2))
    ref_q2 = _reference_branch(query_small, params["query"])
    assert q2.shape == (6, z_dim)
    assert jnp.allclose(s2, ref_s, atol=1e-4, rtol=1e-4)
    assert jnp.allclose(q2, ref_q2, atol=1e-4, rtol=1e-4)

    print("KERNEL_OK")
</pallas_src>

<mosaic_0001>
module attributes {stable_mosaic.version = 11 : i64} {
  func.func @_registrator_kernel(%arg0: i32, %arg1: memref<2x8x32xf32, #tpu.memory_space<vmem>>, %arg2: memref<2x32x128xf32, #tpu.memory_space<vmem>>, %arg3: memref<4x128xf32, #tpu.memory_space<vmem>>, %arg4: memref<2x8x128xf32, #tpu.memory_space<vmem>>) attributes {dimension_semantics = [#tpu.dimension_semantics<parallel>], iteration_bounds = array<i64: 1>, scalar_prefetch = 0 : i64, scratch_operands = 0 : i64, tpu.core_type = #tpu.core_type<tc>, window_params = [{pipeline_mode = #tpu.pipeline_mode<synchronous>, transform_indices = @transform_0, window_bounds = array<i64: 2, 8, 32>}, {transform_indices = @transform_1, window_bounds = array<i64: 2, 32, 128>}, {transform_indices = @transform_2, window_bounds = array<i64: 4, 128>}, {transform_indices = @transform_3, window_bounds = array<i64: 2, 8, 128>}]} {
    %c0 = arith.constant 0 : index
    %c0_0 = arith.constant 0 : index
    %0 = vector.load %arg3[%c0, %c0_0] : memref<4x128xf32, #tpu.memory_space<vmem>>, vector<4x128xf32>
    %c0_1 = arith.constant 0 : index
    %c0_2 = arith.constant 0 : index
    %c0_3 = arith.constant 0 : index
    %1 = vector.load %arg1[%c0_1, %c0_2, %c0_3] : memref<2x8x32xf32, #tpu.memory_space<vmem>>, vector<1x8x32xf32>
    %2 = vector.shape_cast %1 : vector<1x8x32xf32> to vector<8x32xf32>
    %c0_4 = arith.constant 0 : index
    %c0_5 = arith.constant 0 : index
    %c0_6 = arith.constant 0 : index
    %3 = vector.load %arg2[%c0_4, %c0_5, %c0_6] : memref<2x32x128xf32, #tpu.memory_space<vmem>>, vector<1x32x128xf32>
    %4 = vector.shape_cast %3 : vector<1x32x128xf32> to vector<32x128xf32>
    %cst = arith.constant dense<0.000000e+00> : vector<8x128xf32>
    %5 = tpu.matmul %2, %4, %cst {dimension_numbers = #tpu.dot_dimension_numbers<[1], [0], [0], [1], [0, 0, 1, 1], [], []>} : vector<8x32xf32>, vector<32x128xf32>, vector<8x128xf32> -> vector<8x128xf32>
    %cst_7 = arith.constant dense<0.000000e+00> : vector<128xf32>
    %6 = vector.multi_reduction <add>, %5, %cst_7 [0] : vector<8x128xf32> to vector<128xf32>
    %7 = vector.shape_cast %6 : vector<128xf32> to vector<1x128xf32>
    %cst_8 = arith.constant 1.250000e-01 : f32
    %8 = vector.broadcast %cst_8 : f32 to vector<1x128xf32>
    %9 = arith.mulf %7, %8 : vector<1x128xf32>
    %10 = vector.broadcast %9 : vector<1x128xf32> to vector<8x128xf32>
    %11 = arith.subf %5, %10 : vector<8x128xf32>
    %12 = arith.mulf %11, %11 : vector<8x128xf32>
    %cst_9 = arith.constant dense<0.000000e+00> : vector<128xf32>
    %13 = vector.multi_reduction <add>, %12, %cst_9 [0] : vector<8x128xf32> to vector<128xf32>
    %14 = vector.shape_cast %13 : vector<128xf32> to vector<1x128xf32>
    %cst_10 = arith.constant 1.250000e-01 : f32
    %15 = vector.broadcast %cst_10 : f32 to vector<1x128xf32>
    %16 = arith.mulf %14, %15 : vector<1x128xf32>
    %17 = vector.extract_strided_slice %0 {offsets = [0, 0], sizes = [1, 128], strides = [1, 1]} : vector<4x128xf32> to vector<1x128xf32>
    %18 = vector.extract_strided_slice %0 {offsets = [1, 0], sizes = [1, 128], strides = [1, 1]} : vector<4x128xf32> to vector<1x128xf32>
    %cst_11 = arith.constant 9.99999974E-6 : f32
    %19 = vector.broadcast %cst_11 : f32 to vector<1x128xf32>
    %20 = arith.addf %16, %19 : vector<1x128xf32>
    %21 = math.rsqrt %20 : vector<1x128xf32>
    %22 = arith.mulf %17, %21 : vector<1x128xf32>
    %23 = arith.mulf %9, %22 : vector<1x128xf32>
    %24 = arith.subf %18, %23 : vector<1x128xf32>
    %25 = vector.broadcast %22 : vector<1x128xf32> to vector<8x128xf32>
    %26 = arith.mulf %5, %25 : vector<8x128xf32>
    %27 = vector.broadcast %24 : vector<1x128xf32> to vector<8x128xf32>
    %28 = arith.addf %26, %27 : vector<8x128xf32>
    %cst_12 = arith.constant 0.000000e+00 : f32
    %29 = vector.broadcast %cst_12 : f32 to vector<8x128xf32>
    %30 = arith.maximumf %28, %29 : vector<8x128xf32>
    %c0_13 = arith.constant 0 : index
    %c0_14 = arith.constant 0 : index
    %c0_15 = arith.constant 0 : index
    %31 = vector.load %arg4[%c0_13, %c0_14, %c0_15] : memref<2x8x128xf32, #tpu.memory_space<vmem>>, vector<1x8x128xf32>
    %32 = vector.shape_cast %31 : vector<1x8x128xf32> to vector<8x128xf32>
    %33 = vector.shape_cast %30 : vector<8x128xf32> to vector<1x8x128xf32>
    tpu.vector_store %arg4[%c0_13, %c0_14, %c0_15], %33 {strides = array<i32>} : memref<2x8x128xf32, #tpu.memory_space<vmem>>, vector<1x8x128xf32>,
    %c1 = arith.constant 1 : index
    %c0_16 = arith.constant 0 : index
    %c0_17 = arith.constant 0 : index
    %34 = vector.load %arg1[%c1, %c0_16, %c0_17] : memref<2x8x32xf32, #tpu.memory_space<vmem>>, vector<1x8x32xf32>
    %35 = vector.shape_cast %34 : vector<1x8x32xf32> to vector<8x32xf32>
    %c1_18 = arith.constant 1 : index
    %c0_19 = arith.constant 0 : index
    %c0_20 = arith.constant 0 : index
    %36 = vector.load %arg2[%c1_18, %c0_19, %c0_20] : memref<2x32x128xf32, #tpu.memory_space<vmem>>, vector<1x32x128xf32>
    %37 = vector.shape_cast %36 : vector<1x32x128xf32> to vector<32x128xf32>
    %cst_21 = arith.constant dense<0.000000e+00> : vector<8x128xf32>
    %38 = tpu.matmul %35, %37, %cst_21 {dimension_numbers = #tpu.dot_dimension_numbers<[1], [0], [0], [1], [0, 0, 1, 1], [], []>} : vector<8x32xf32>, vector<32x128xf32>, vector<8x128xf32> -> vector<8x128xf32>
    %cst_22 = arith.constant dense<0.000000e+00> : vector<128xf32>
    %39 = vector.multi_reduction <add>, %38, %cst_22 [0] : vector<8x128xf32> to vector<128xf32>
    %40 = vector.shape_cast %39 : vector<128xf32> to vector<1x128xf32>
    %cst_23 = arith.constant 1.250000e-01 : f32
    %41 = vector.broadcast %cst_23 : f32 to vector<1x128xf32>
    %42 = arith.mulf %40, %41 : vector<1x128xf32>
    %43 = vector.broadcast %42 : vector<1x128xf32> to vector<8x128xf32>
    %44 = arith.subf %38, %43 : vector<8x128xf32>
    %45 = arith.mulf %44, %44 : vector<8x128xf32>
    %cst_24 = arith.constant dense<0.000000e+00> : vector<128xf32>
    %46 = vector.multi_reduction <add>, %45, %cst_24 [0] : vector<8x128xf32> to vector<128xf32>
    %47 = vector.shape_cast %46 : vector<128xf32> to vector<1x128xf32>
    %cst_25 = arith.constant 1.250000e-01 : f32
    %48 = vector.broadcast %cst_25 : f32 to vector<1x128xf32>
    %49 = arith.mulf %47, %48 : vector<1x128xf32>
    %50 = vector.extract_strided_slice %0 {offsets = [2, 0], sizes = [1, 128], strides = [1, 1]} : vector<4x128xf32> to vector<1x128xf32>
    %51 = vector.extract_strided_slice %0 {offsets = [3, 0], sizes = [1, 128], strides = [1, 1]} : vector<4x128xf32> to vector<1x128xf32>
    %cst_26 = arith.constant 9.99999974E-6 : f32
    %52 = vector.broadcast %cst_26 : f32 to vector<1x128xf32>
    %53 = arith.addf %49, %52 : vector<1x128xf32>
    %54 = math.rsqrt %53 : vector<1x128xf32>
    %55 = arith.mulf %50, %54 : vector<1x128xf32>
    %56 = arith.mulf %42, %55 : vector<1x128xf32>
    %57 = arith.subf %51, %56 : vector<1x128xf32>
    %58 = vector.broadcast %55 : vector<1x128xf32> to vector<8x128xf32>
    %59 = arith.mulf %38, %58 : vector<8x128xf32>
    %60 = vector.broadcast %57 : vector<1x128xf32> to vector<8x128xf32>
    %61 = arith.addf %59, %60 : vector<8x128xf32>
    %cst_27 = arith.constant 0.000000e+00 : f32
    %62 = vector.broadcast %cst_27 : f32 to vector<8x128xf32>
    %63 = arith.maximumf %61, %62 : vector<8x128xf32>
    %c1_28 = arith.constant 1 : index
    %c0_29 = arith.constant 0 : index
    %c0_30 = arith.constant 0 : index
    %64 = vector.load %arg4[%c1_28, %c0_29, %c0_30] : memref<2x8x128xf32, #tpu.memory_space<vmem>>, vector<1x8x128xf32>
    %65 = vector.shape_cast %64 : vector<1x8x128xf32> to vector<8x128xf32>
    %66 = vector.shape_cast %63 : vector<8x128xf32> to vector<1x8x128xf32>
    tpu.vector_store %arg4[%c1_28, %c0_29, %c0_30], %66 {strides = array<i32>} : memref<2x8x128xf32, #tpu.memory_space<vmem>>, vector<1x8x128xf32>,
    return
  }
  func.func @transform_0(%arg0: i32) -> (i32, i32, i32) {
    %c0_i32 = arith.constant 0 : i32
    %c0_i32_0 = arith.constant 0 : i32
    %c0_i32_1 = arith.constant 0 : i32
    %c0_i32_2 = arith.constant 0 : i32
    return %c0_i32, %c0_i32_0, %c0_i32_1 : i32, i32, i32
  }
  func.func @transform_1(%arg0: i32) -> (i32, i32, i32) {
    %c0_i32 = arith.constant 0 : i32
    %c0_i32_0 = arith.constant 0 : i32
    %c0_i32_1 = arith.constant 0 : i32
    return %c0_i32, %c0_i32_0, %arg0 : i32, i32, i32
  }
  func.func @transform_2(%arg0: i32) -> (i32, i32) {
    %c0_i32 = arith.constant 0 : i32
    %c0_i32_0 = arith.constant 0 : i32
    return %c0_i32, %arg0 : i32, i32
  }
  func.func @transform_3(%arg0: i32) -> (i32, i32, i32) {
    %c0_i32 = arith.constant 0 : i32
    %c0_i32_0 = arith.constant 0 : i32
    %c0_i32_1 = arith.constant 0 : i32
    return %c0_i32, %c0_i32_0, %arg0 : i32, i32, i32
  }
}

</mosaic_0001>

<llo_original>
// kernel: tpu_custom_call.1
$region0: #{tpu_custom_call.1}
  #allocation0 [shape = 'u32[]', space=smem, size = 0x4, offset = 0x4, fixed_abs, tag = 'smem constant byte address 0x4 - core index']
  #allocation1 [shape = 'u32[144,128]{1,0:T(1,128)}', space=vmem, size = 0x12000, scoped, tag = 'internal scratch']
  %s0 = inlined_call_operand.hbm [shape: f32[2,8,32], index: 0, kind: input, shape index: {}]
  %s1 = inlined_call_operand.hbm [shape: f32[2,32,128], index: 1, kind: input, shape index: {}]
  %s2 = inlined_call_operand.vmem [shape: f32[4,128], index: 2, kind: input, shape index: {}]
  %s3 = inlined_call_operand.hbm [shape: f32[2,8,128], index: 3, kind: output, shape index: {}]
  %s4 = sld [smem:[#allocation0]]
  $region30: #{tpu_custom_call.1} parent=0
    _
  %s6 = ssub.s32 1, %s4
  %s7 = scalar_select 0, %s6, %s4
  $region1: #{tpu_custom_call.1} parent=0
    #allocation2 [shape = 'u8[8192]{0}', space=vmem, size = 0x2000, scoped, tag = 'input window, operand 0, single buffered']
    #allocation3 [shape = 's32[1]{0}', space=sflag, size = 0x4, scoped, tag = 'scoped memory for tpu_custom_call.1']
    #allocation4 [shape = 's32[1]{0}', space=sflag, size = 0x4, scoped, tag = 'scoped memory for tpu_custom_call.1']
    #allocation5 [shape = 'u8[32768]{0}', space=vmem, size = 0x8000, scoped, tag = 'input window, operand 1, single buffered']
    #allocation6 [shape = 's32[1]{0}', space=sflag, size = 0x4, scoped, tag = 'scoped memory for tpu_custom_call.1']
    #allocation7 [shape = 'u8[8192]{0}', space=vmem, size = 0x2000, scoped, tag = 'output window, operand 0, single buffered']
    %8 = vsyncpa [#allocation3], 0
    %9 = vsyncpa [#allocation6], 0
    %10 = vsyncpa [#allocation4], 0
    // Predicated region
    $region2: #{tpu_custom_call.1} parent=1 // pred_check
      _
    $region3: #{tpu_custom_call.1} parent=1 // pred_check_branch
      %12 = sbr.rel (0) target = $region5
    $region4: #{tpu_custom_call.1} parent=1 // pred_region
      %s14 = ssub.s32 256, 256
      %15 = vsyncadd [#allocation3], %s14
      %s16 = sshll.u32 [#allocation2], 4
      %s17 = int_to_ptr.vmem [resolvable:$true] %s16
      %22 = dma.hbm_to_vmem [thread:$0]  %s0, 256, %s17, [#allocation3], 128, 128, 8
    $region5: #{tpu_custom_call.1} parent=1 // pred_fallthru
      _
    // Predicated region
    $region6: #{tpu_custom_call.1} parent=1 // pred_check
      _
    $region7: #{tpu_custom_call.1} parent=1 // pred_check_branch
      %24 = sbr.rel (0) target = $region9
    $region8: #{tpu_custom_call.1} parent=1 // pred_region
      %s26 = ssub.s32 1024, 1024
      %27 = vsyncadd [#allocation6], %s26
      %s28 = sshll.u32 [#allocation5], 4
      %s29 = int_to_ptr.vmem [resolvable:$true] %s28
      %34 = dma.hbm_to_vmem [thread:$0]  %s1, 1024, %s29, [#allocation6], 128, 128, 8
    $region9: #{tpu_custom_call.1} parent=1 // pred_fallthru
      _
    // Predicated region
    $region10: #{tpu_custom_call.1} parent=1 // pred_check
      _
    $region11: #{tpu_custom_call.1} parent=1 // pred_check_branch
      %36 = sbr.rel (0) target = $region13
    $region12: #{tpu_custom_call.1} parent=1 // pred_region
      _
    $region13: #{tpu_custom_call.1} parent=1 // pred_fallthru
      _
    // Predicated region
    $region14: #{tpu_custom_call.1} parent=1 // pred_check
      _
    $region15: #{tpu_custom_call.1} parent=1 // pred_check_branch
      %38 = sbr.rel (0) target = $region17
    $region16: #{tpu_custom_call.1} parent=1 // pred_region
      %39 = dma.done [#allocation3], 256
    $region17: #{tpu_custom_call.1} parent=1 // pred_fallthru
      _
    // Predicated region
    $region18: #{tpu_custom_call.1} parent=1 // pred_check
      _
    $region19: #{tpu_custom_call.1} parent=1 // pred_check_branch
      %41 = sbr.rel (0) target = $region21
    $region20: #{tpu_custom_call.1} parent=1 // pred_region
      %42 = dma.done [#allocation6], 1024
    $region21: #{tpu_custom_call.1} parent=1 // pred_fallthru
      _
    %v43 = vld [vmem:[%s2] sm:$0xf]
    %v44 = vld [vmem:[#allocation2] sm:$0xff]
    %v45 = vld [vmem:[#allocation5] sm:$0xff]
    %v46 = vld [vmem:[#allocation5 + $0x8] sm:$0xff]
    %v47 = vld [vmem:[#allocation5 + $0x10] sm:$0xff]
    %v48 = vld [vmem:[#allocation5 + $0x18] sm:$0xff]
    %vm49 = vcmask 261120
    %v51 = vsel %vm49, %v44, 0
    %53 = vmatprep.subr.mxu0 0.0
    %54 = vmatpush1.msra.mxu0 %v45
    %55 = vmatprep.subr.mxu0 0.0
    %56 = vmatpush1.msra.mxu0 %v46
    %57 = vmatprep.subr.mxu0 0.0
    %58 = vmatpush1.msra.mxu0 %v47
    %59 = vmatprep.subr.mxu0 0.0
    %60 = vmatpush1.msra.mxu0 %v48
    %61 = vmatprep.subr.mxu0 0.0
    %62 = vmatpush1.msra.mxu0 0.0
    %63 = vmatprep.subr.mxu0 0.0
    %64 = vmatpush1.msra.mxu0 0.0
    %65 = vmatprep.subr.mxu0 0.0
    %66 = vmatpush1.msra.mxu0 0.0
    %67 = vmatprep.subr.mxu0 0.0
    %68 = vmatpush1.msra.mxu0 0.0
    %69 = vmatprep.subr.mxu0 0.0
    %70 = vmatpush1.msra.mxu0 0.0
    %71 = vmatprep.subr.mxu0 0.0
    %72 = vmatpush1.msra.mxu0 0.0
    %73 = vmatprep.subr.mxu0 0.0
    %74 = vmatpush1.msra.mxu0 0.0
    %75 = vmatprep.subr.mxu0 0.0
    %76 = vmatpush1.msra.mxu0 0.0
    %77 = vmatprep.subr.mxu0 0.0
    %78 = vmatpush1.msra.mxu0 0.0
    %79 = vmatprep.subr.mxu0 0.0
    %80 = vmatpush1.msra.mxu0 0.0
    %81 = vmatprep.subr.mxu0 0.0
    %82 = vmatpush1.msra.mxu0 0.0
    %83 = vmatprep.subr.mxu0 0.0
    %84 = vmatpush1.msra.mxu0 0.0
    %85 = vmatprep.subr.mxu0 0.0
    %86 = vmatpush1.msra.mxu0 0.0
    %87 = vmatprep.subr.mxu0 0.0
    %88 = vmatpush1.msra.mxu0 0.0
    %89 = vmatprep.subr.mxu0 0.0
    %90 = vmatpush1.msra.mxu0 0.0
    %91 = vmatprep.subr.mxu0 0.0
    %92 = vmatpush1.msra.mxu0 0.0
    %93 = vmatprep.subr.mxu0 0.0
    %94 = vmatpush1.msra.mxu0 0.0
    %95 = vmatprep.subr.mxu0 0.0
    %96 = vmatpush1.msra.mxu0 0.0
    %97 = vmatprep.subr.mxu0 0.0
    %98 = vmatpush1.msra.mxu0 0.0
    %99 = vmatprep.subr.mxu0 0.0
    %100 = vmatpush1.msra.mxu0 0.0
    %101 = vmatprep.subr.mxu0 0.0
    %102 = vmatpush1.msra.mxu0 0.0
    %103 = vmatprep.subr.mxu0 0.0
    %104 = vmatpush1.msra.mxu0 0.0
    %105 = vmatprep.subr.mxu0 0.0
    %106 = vmatpush1.msra.mxu0 0.0
    %107 = vmatprep.subr.mxu0 0.0
    %108 = vmatpush1.msra.mxu0 0.0
    %109 = vmatprep.subr.mxu0 0.0
    %110 = vmatpush1.msra.mxu0 0.0
    %111 = vmatprep.subr.mxu0 0.0
    %112 = vmatpush1.msra.mxu0 0.0
    %113 = vmatprep.subr.mxu0 0.0
    %114 = vmatpush1.msra.mxu0 0.0
    %115 = vmatprep.subr.mxu0 0.0
    %116 = vmatpush1.msra.mxu0 0.0
    %117 = vmatprep.mubr.f32.mxu0 0.0
    %118 = vmatmul.mubr.f32.gmra.mrb[0].mxu0 %v51
    %v119 = vpop.f32.mrb[0].mxu0
    %v120 = vadd.f32 0.0, %v119
    %v121 = vpop.f32.mrb[0].mxu0
    %122 = vdwg.mxu0
    %v123 = vrot.slane %v120, 4
    %v124 = vadd.f32 %v120, %v123
    %v125 = vrot.slane %v124, 2
    %v126 = vadd.f32 %v124, %v125
    %v127 = vrot.slane %v126, 1
    %v128 = vadd.f32 %v126, %v127
    %v129 = vmul.f32 %v128, 0.125
    %v130 = vsub.f32 %v120, %v129
    %v131 = vmul.f32 %v130, %v130
    %v132 = vrot.slane %v131, 4
    %v133 = vadd.f32 %v131, %v132
    %v134 = vrot.slane %v133, 2
    %v135 = vadd.f32 %v133, %v134
    %v136 = vrot.slane %v135, 1
    %v137 = vadd.f32 %v135, %v136
    %v138 = vmul.f32 %v137, 0.125
    %v139 = vadd.f32 %v138, 1e-05
    %v140 = vrsqrt.pop %v139
    %v141 = vmul.f32 %v43, %v140
    %v142 = vmul.f32 %v129, %v141
    %v144 = vrot.slane %v142, 7
    %v146 = vsub.f32 %v43, %v144
    %v147 = vlaneseq
    %v148 = vshrl.u32 %v147, 7
    %v149 = vsub.s32 0, %v148
    %v150 = vrot.slane %v141, %v149
    %v151 = vmul.f32 %v120, %v150
    %v152 = vlaneseq
    %v153 = vshrl.u32 %v152, 7
    %v154 = vsub.s32 1, %v153
    %v155 = vrot.slane %v146, %v154
    %v156 = vadd.f32 %v151, %v155
    %v157 = vmax.f32 %v156, 0.0
    %158 = vst [vmem:[#allocation7] sm:$0xff] %v157
    %s159 = scalar_lea.vmem [#allocation2], 8
    %v160 = vld [vmem:[%s159] sm:$0xff]
    %s161 = scalar_lea.vmem [#allocation5], 32
    %v162 = vld [vmem:[%s161] sm:$0xff]
    %v163 = vld [vmem:[%s161 + $0x8] sm:$0xff]
    %v164 = vld [vmem:[%s161 + $0x10] sm:$0xff]
    %v165 = vld [vmem:[%s161 + $0x18] sm:$0xff]
    %v167 = vsel %vm49, %v160, 0
    %169 = vmatprep.subr.mxu0 0.0
    %170 = vmatpush1.msra.mxu0 %v162
    %171 = vmatprep.subr.mxu0 0.0
    %172 = vmatpush1.msra.mxu0 %v163
    %173 = vmatprep.subr.mxu0 0.0
    %174 = vmatpush1.msra.mxu0 %v164
    %175 = vmatprep.subr.mxu0 0.0
    %176 = vmatpush1.msra.mxu0 %v165
    %177 = vmatprep.subr.mxu0 0.0
    %178 = vmatpush1.msra.mxu0 0.0
    %179 = vmatprep.subr.mxu0 0.0
    %180 = vmatpush1.msra.mxu0 0.0
    %181 = vmatprep.subr.mxu0 0.0
    %182 = vmatpush1.msra.mxu0 0.0
    %183 = vmatprep.subr.mxu0 0.0
    %184 = vmatpush1.msra.mxu0 0.0
    %185 = vmatprep.subr.mxu0 0.0
    %186 = vmatpush1.msra.mxu0 0.0
    %187 = vmatprep.subr.mxu0 0.0
    %188 = vmatpush1.msra.mxu0 0.0
    %189 = vmatprep.subr.mxu0 0.0
    %190 = vmatpush1.msra.mxu0 0.0
    %191 = vmatprep.subr.mxu0 0.0
    %192 = vmatpush1.msra.mxu0 0.0
    %193 = vmatprep.subr.mxu0 0.0
    %194 = vmatpush1.msra.mxu0 0.0
    %195 = vmatprep.subr.mxu0 0.0
    %196 = vmatpush1.msra.mxu0 0.0
    %197 = vmatprep.subr.mxu0 0.0
    %198 = vmatpush1.msra.mxu0 0.0
    %199 = vmatprep.subr.mxu0 0.0
    %200 = vmatpush1.msra.mxu0 0.0
    %201 = vmatprep.subr.mxu0 0.0
    %202 = vmatpush1.msra.mxu0 0.0
    %203 = vmatprep.subr.mxu0 0.0
    %204 = vmatpush1.msra.mxu0 0.0
    %205 = vmatprep.subr.mxu0 0.0
    %206 = vmatpush1.msra.mxu0 0.0
    %207 = vmatprep.subr.mxu0 0.0
    %208 = vmatpush1.msra.mxu0 0.0
    %209 = vmatprep.subr.mxu0 0.0
    %210 = vmatpush1.msra.mxu0 0.0
    %211 = vmatprep.subr.mxu0 0.0
    %212 = vmatpush1.msra.mxu0 0.0
    %213 = vmatprep.subr.mxu0 0.0
    %214 = vmatpush1.msra.mxu0 0.0
    %215 = vmatprep.subr.mxu0 0.0
    %216 = vmatpush1.msra.mxu0 0.0
    %217 = vmatprep.subr.mxu0 0.0
    %218 = vmatpush1.msra.mxu0 0.0
    %219 = vmatprep.subr.mxu0 0.0
    %220 = vmatpush1.msra.mxu0 0.0
    %221 = vmatprep.subr.mxu0 0.0
    %222 = vmatpush1.msra.mxu0 0.0
    %223 = vmatprep.subr.mxu0 0.0
    %224 = vmatpush1.msra.mxu0 0.0
    %225 = vmatprep.subr.mxu0 0.0
    %226 = vmatpush1.msra.mxu0 0.0
    %227 = vmatprep.subr.mxu0 0.0
    %228 = vmatpush1.msra.mxu0 0.0
    %229 = vmatprep.subr.mxu0 0.0
    %230 = vmatpush1.msra.mxu0 0.0
    %231 = vmatprep.subr.mxu0 0.0
    %232 = vmatpush1.msra.mxu0 0.0
    %233 = vmatprep.mubr.f32.mxu0 0.0
    %234 = vmatmul.mubr.f32.gmra.mrb[0].mxu0 %v167
    %v235 = vpop.f32.mrb[0].mxu0
    %v236 = vadd.f32 0.0, %v235
    %v237 = vpop.f32.mrb[0].mxu0
    %238 = vdwg.mxu0
    %v239 = vrot.slane %v236, 4
    %v240 = vadd.f32 %v236, %v239
    %v241 = vrot.slane %v240, 2
    %v242 = vadd.f32 %v240, %v241
    %v243 = vrot.slane %v242, 1
    %v244 = vadd.f32 %v242, %v243
    %v245 = vmul.f32 %v244, 0.125
    %v246 = vsub.f32 %v236, %v245
    %v247 = vmul.f32 %v246, %v246
    %v248 = vrot.slane %v247, 4
    %v249 = vadd.f32 %v247, %v248
    %v250 = vrot.slane %v249, 2
    %v251 = vadd.f32 %v249, %v250
    %v252 = vrot.slane %v251, 1
    %v253 = vadd.f32 %v251, %v252
    %v254 = vmul.f32 %v253, 0.125
    %v255 = vadd.f32 %v254, 1e-05
    %v256 = vrsqrt.pop %v255
    %v257 = vmul.f32 %v43, %v256
    %v258 = vmul.f32 %v245, %v257
    %v260 = vrot.slane %v258, 7
    %v262 = vsub.f32 %v43, %v260
    %v263 = vlaneseq
    %v264 = vshrl.u32 %v263, 7
    %v265 = vsub.s32 2, %v264
    %v266 = vrot.slane %v257, %v265
    %v267 = vmul.f32 %v236, %v266
    %v268 = vlaneseq
    %v269 = vshrl.u32 %v268, 7
    %v270 = vsub.s32 3, %v269
    %v271 = vrot.slane %v262, %v270
    %v272 = vadd.f32 %v267, %v271
    %v273 = vmax.f32 %v272, 0.0
    %s274 = scalar_lea.vmem [#allocation7], 8
    %275 = vst [vmem:[%s274] sm:$0xff] %v273
    // Predicated region
    $region22: #{tpu_custom_call.1} parent=1 // pred_check
      _
    $region23: #{tpu_custom_call.1} parent=1 // pred_check_branch
      %277 = sbr.rel (0) target = $region25
    $region24: #{tpu_custom_call.1} parent=1 // pred_region
      %s279 = ssub.s32 256, 256
      %280 = vsyncadd [#allocation4], %s279
      %s281 = sshll.u32 [#allocation7], 4
      %s282 = int_to_ptr.vmem [resolvable:$true] %s281
      %287 = dma.vmem_to_hbm [thread:$0]  %s282, 256, %s3, [#allocation4], 128, 128, 8
    $region25: #{tpu_custom_call.1} parent=1 // pred_fallthru
      _
    // Predicated region
    $region26: #{tpu_custom_call.1} parent=1 // pred_check
      _
    $region27: #{tpu_custom_call.1} parent=1 // pred_check_branch
      %289 = sbr.rel (0) target = $region29
    $region28: #{tpu_custom_call.1} parent=1 // pred_region
      %290 = dma.done [#allocation4], 256
    $region29: #{tpu_custom_call.1} parent=1 // pred_fallthru
      _
    %291 = vsyncpa [#allocation3], 1
    %292 = vsyncpa [#allocation6], 1
    %293 = vsyncpa [#allocation4], 1

</llo_original>
